<compile_context>
chip_gen: v7x
topology: tpu7x:2x2x1
jax: 0.10.0
libtpu: 0.0.40
codegen_flags: <defaults>
</compile_context>

<pallas_src>
import functools

import jax
import jax.numpy as jnp
from jax.experimental import pallas as pl
from jax.experimental.pallas import tpu as pltpu


def _round_up(x, m):
    return ((x + m - 1) // m) * m


def _choose_thw(hw128, target, min_tiles, max_thw=2048):
    """Spatial tile (multiple of 128) near `target` that minimizes padding.

    Prefers an exact divisor of hw128 (zero extra padding); otherwise falls
    back to a near-target tile with less than one tile of padding.
    """
    k = hw128 // 128
    best = None
    for m in range(1, k + 1):
        thw = m * 128
        if thw > max_thw:
            break
        if k % m != 0:
            continue
        if (k // m) < min_tiles:
            continue
        score = abs(thw - target)
        if best is None or score < best[0]:
            best = (score, thw)
    if best is not None and best[1] >= min(512, hw128):
        return best[1]
    nt = max(min_tiles, max(1, hw128 // target))
    return min(max_thw, _round_up(pl.cdiv(hw128, nt), 128))


def _choose_c2_tile(c2, thw, budget_bytes=4 << 20):
    """Tile C2 (tc2 | C2, tc2 % 8 == 0) so the f32 (tc2, thw) result stays small."""
    if c2 * thw * 4 <= budget_bytes:
        return c2
    best = None
    for tc2 in range(8, c2, 8):
        if c2 % tc2 == 0 and tc2 * thw * 4 <= budget_bytes:
            best = tc2
    return best if best is not None else c2


def _point_conv_kernel(x_ref, w_ref, shift_ref, o_ref, *, act_mode):
    # x_ref:     (1, C1, THW)   input tile, spatial on lanes
    # w_ref:     (tc2, C1)      BN-scale-folded weight (resident in VMEM)
    # shift_ref: (tc2, 1)       folded BN shift (f32)
    # o_ref:     (1, tc2, THW)  output tile, spatial on lanes
    y = jnp.dot(w_ref[...], x_ref[0], preferred_element_type=jnp.float32)  # (tc2, THW) f32
    y = y + shift_ref[...]                      # broadcast per-channel shift over lanes
    if act_mode == "hswish":
        # Hardswish: y * relu6(y + 3) / 6   (f32 epilogue, cast only at the store)
        y = y * jnp.clip(y + 3.0, 0.0, 6.0) * (1.0 / 6.0)
    elif act_mode == "relu":
        y = jnp.maximum(y, 0.0)
    # act_mode == "identity": pass through
    o_ref[0] = y.astype(o_ref.dtype)


def elastic_point_conv(x_nchw, conv_weight, bn_gamma, bn_beta, bn_mean, bn_var,
                       eps=1e-5, act=True, act_type="hswish", target_thw=1024):
    """1x1 conv + folded (inference) BatchNorm2d + activation, NCHW in / NCHW out.

    x_nchw:      (N, C1, H, W)
    conv_weight: (C2, C1, 1, 1)  as in nn.Conv2d(bias=False)
    bn_*:        (C2,)           BatchNorm2d affine params / running stats
    """
    N, C1, H, W = x_nchw.shape
    C2 = conv_weight.shape[0]
    hw = H * W
    x_dtype = x_nchw.dtype
    bytes_el = jnp.dtype(x_dtype).itemsize

    act_mode = ("hswish" if act_type == "hswish" else "relu") if act else "identity"

    # --- fold BN into the weight (scale) and a per-channel shift -------------
    scale = bn_gamma / jnp.sqrt(bn_var + eps)                         # (C2,)
    shift = (bn_beta - bn_mean * scale).astype(jnp.float32).reshape(C2, 1)
    w_mat = (conv_weight.reshape(C2, C1).astype(jnp.float32)
             * scale[:, None]).astype(x_dtype)                        # (C2, C1)

    # --- generation-aware VMEM budget -----------------------------------------
    try:
        phys_vmem = int(pltpu.get_tpu_info().vmem_capacity_bytes)
    except Exception:
        phys_vmem = 64 * 1024 * 1024                                  # conservative (v7x)
    # Leave headroom for compiler scratch/spill; never ask for more than ~100 MiB.
    vmem_cap = min(phys_vmem - (8 << 20), 100 << 20)

    hw128 = _round_up(hw, 128)
    # v7x has 2 TensorCores: give both work when N == 1 (no-op on v5e/v6e).
    min_tiles = 2 if (N == 1 and hw128 >= 256) else 1

    def _footprint(thw_, tc2_, x_bufs_):
        return (x_bufs_ * C1 * thw_ * bytes_el        # pipelined x tiles
                + 2 * tc2_ * thw_ * bytes_el          # double-buffered output tiles
                + tc2_ * C1 * bytes_el                # resident weight (single buffer)
                + tc2_ * 4                            # resident shift
                + 2 * tc2_ * thw_ * 4)                # f32 matmul result + epilogue temps

    thw = _choose_thw(hw128, target_thw, min_tiles)
    while True:
        tc2 = _choose_c2_tile(C2, thw)
        if C2 % tc2 != 0:                             # defensive; chooser only returns divisors
            tc2 = C2
        nct = C2 // tc2
        nt = pl.cdiv(hw128, thw)
        steps = N * nct * nt
        # 3-deep input buffering hides per-step DMA issue latency for small tiles
        # (only worthwhile when the grid actually has a few steps).
        x_bufs = 3 if (C1 * thw * bytes_el < (1 << 20) and steps >= 4) else 2
        if _footprint(thw, tc2, x_bufs) <= (vmem_cap * 3) // 4 or thw <= 256:
            break
        thw = max(256, _round_up(thw // 2, 128))

    hw_pad = nt * thw

    # --- spatial-on-lane layout: (N, C1, HW); minimal zero-pad if needed ------
    x3 = x_nchw.reshape(N, C1, hw)
    if hw_pad != hw:
        x3 = jnp.pad(x3, ((0, 0), (0, 0), (0, hw_pad - hw)))

    est_vmem = _footprint(thw, tc2, x_bufs)
    vmem_limit = int(min(vmem_cap, max(est_vmem * 2, 24 << 20)))

    cost = pl.CostEstimate(
        flops=2 * N * hw_pad * C1 * C2,
        transcendentals=0,
        bytes_accessed=(N * nct * C1 * hw_pad * bytes_el   # x (re-read once per C2 tile)
                        + N * C2 * hw_pad * bytes_el       # output
                        + N * C2 * C1 * bytes_el           # weight
                        + C2 * 4),                         # shift
    )

    x_spec_kwargs = {}
    if x_bufs != 2:
        x_spec_kwargs["pipeline_mode"] = pl.Buffered(x_bufs)

    grid = (N, nct, nt)
    out3 = pl.pallas_call(
        functools.partial(_point_conv_kernel, act_mode=act_mode),
        out_shape=jax.ShapeDtypeStruct((N, C2, hw_pad), x_dtype),
        grid_spec=pltpu.PrefetchScalarGridSpec(
            num_scalar_prefetch=0,
            grid=grid,
            in_specs=[
                # streaming x tile (spatial on lanes)
                pl.BlockSpec((1, C1, thw), lambda n, c, t: (n, 0, t), **x_spec_kwargs),
                # resident weight / shift: index_map constant along n, t -> single buffer
                pl.BlockSpec((tc2, C1), lambda n, c, t: (c, 0),
                             pipeline_mode=pl.Buffered(1)),
                pl.BlockSpec((tc2, 1), lambda n, c, t: (c, 0),
                             pipeline_mode=pl.Buffered(1)),
            ],
            out_specs=pl.BlockSpec((1, tc2, thw), lambda n, c, t: (n, c, t)),
        ),
        compiler_params=pltpu.CompilerParams(
            dimension_semantics=("parallel", "parallel", "parallel"),
            vmem_limit_bytes=vmem_limit,
        ),
        cost_estimate=cost,
    )(x3, w_mat, shift)

    # Slice off spatial padding and restore NCHW (no transposes needed).
    return out3[:, :, :hw].reshape(N, C2, H, W)


def _reference(x_nchw, conv_weight, bn_gamma, bn_beta, bn_mean, bn_var,
               eps=1e-5, act=True, act_type="hswish"):
    N, C1, H, W = x_nchw.shape
    C2 = conv_weight.shape[0]
    w_mat = conv_weight.reshape(C2, C1)                          # (C2, C1)
    y = jnp.einsum("nchw,oc->nohw", x_nchw, w_mat)               # 1x1 conv
    scale = (bn_gamma / jnp.sqrt(bn_var + eps)).reshape(1, C2, 1, 1)
    shift = (bn_beta - bn_mean * bn_gamma / jnp.sqrt(bn_var + eps)).reshape(1, C2, 1, 1)
    y = y * scale + shift
    if act:
        if act_type == "hswish":
            y = y * jnp.clip(y + 3.0, 0.0, 6.0) / 6.0
        else:
            y = jnp.maximum(y, 0.0)
    return y


if __name__ == "__main__":
    key = jax.random.PRNGKey(0)
    k_x, k_w, k_g, k_b, k_m, k_v, k_x2 = jax.random.split(key, 7)

    N, C1, H, W = 2, 4, 16, 16
    C2 = 8

    x = jax.random.normal(k_x, (N, C1, H, W), dtype=jnp.float32)
    conv_weight = jax.random.normal(k_w, (C2, C1, 1, 1), dtype=jnp.float32) * 0.1
    bn_gamma = 1.0 + 0.1 * jax.random.normal(k_g, (C2,), dtype=jnp.float32)
    bn_beta = 0.1 * jax.random.normal(k_b, (C2,), dtype=jnp.float32)
    bn_mean = 0.1 * jax.random.normal(k_m, (C2,), dtype=jnp.float32)
    bn_var = jnp.abs(jax.random.normal(k_v, (C2,), dtype=jnp.float32)) + 0.5

    # Case 1: default hardswish path, HW a multiple of 128 (no padding, single tile).
    out = elastic_point_conv(x, conv_weight, bn_gamma, bn_beta, bn_mean, bn_var)
    out = jax.block_until_ready(out)
    ref = _reference(x, conv_weight, bn_gamma, bn_beta, bn_mean, bn_var)
    assert out.shape == (N, C2, H, W)
    assert jnp.allclose(out, ref, atol=1e-5, rtol=1e-5), "mismatch vs reference (hswish)"

    # Case 2: remainder spatial size (HW = 100, padded to 128) + relu activation.
    x2 = jax.random.normal(k_x2, (1, C1, 10, 10), dtype=jnp.float32)
    out2 = elastic_point_conv(x2, conv_weight, bn_gamma, bn_beta, bn_mean, bn_var,
                              act=True, act_type="relu")
    out2 = jax.block_until_ready(out2)
    ref2 = _reference(x2, conv_weight, bn_gamma, bn_beta, bn_mean, bn_var,
                      act=True, act_type="relu")
    assert out2.shape == (1, C2, 10, 10)
    assert jnp.allclose(out2, ref2, atol=1e-5, rtol=1e-5), "mismatch vs reference (relu/pad)"

    print("KERNEL_OK")
</pallas_src>

<mosaic_0001>
module attributes {stable_mosaic.version = 11 : i64} {
  func.func @_point_conv_kernel(%arg0: i32, %arg1: i32, %arg2: i32, %arg3: memref<1x4x256xf32, #tpu.memory_space<vmem>>, %arg4: memref<8x4xf32, #tpu.memory_space<vmem>>, %arg5: memref<8x1xf32, #tpu.memory_space<vmem>>, %arg6: memref<1x8x256xf32, #tpu.memory_space<vmem>>) attributes {dimension_semantics = [#tpu.dimension_semantics<parallel>, #tpu.dimension_semantics<parallel>, #tpu.dimension_semantics<parallel>], iteration_bounds = array<i64: 2, 1, 1>, scalar_prefetch = 0 : i64, scratch_operands = 0 : i64, tpu.core_type = #tpu.core_type<tc>, window_params = [{transform_indices = @transform_0, window_bounds = array<i64: 1, 4, 256>}, {pipeline_mode = #tpu.pipeline_mode<synchronous>, transform_indices = @transform_1, window_bounds = array<i64: 8, 4>}, {pipeline_mode = #tpu.pipeline_mode<synchronous>, transform_indices = @transform_2, window_bounds = array<i64: 8, 1>}, {transform_indices = @transform_3, window_bounds = array<i64: 1, 8, 256>}]} {
    %c0 = arith.constant 0 : index
    %c0_0 = arith.constant 0 : index
    %0 = vector.load %arg4[%c0, %c0_0] : memref<8x4xf32, #tpu.memory_space<vmem>>, vector<8x4xf32>
    %c0_1 = arith.constant 0 : index
    %c0_2 = arith.constant 0 : index
    %c0_3 = arith.constant 0 : index
    %1 = vector.load %arg3[%c0_1, %c0_2, %c0_3] : memref<1x4x256xf32, #tpu.memory_space<vmem>>, vector<1x4x256xf32>
    %2 = vector.shape_cast %1 : vector<1x4x256xf32> to vector<4x256xf32>
    %cst = arith.constant dense<0.000000e+00> : vector<8x256xf32>
    %3 = tpu.matmul %0, %2, %cst {dimension_numbers = #tpu.dot_dimension_numbers<[1], [0], [0], [1], [0, 0, 1, 1], [], []>} : vector<8x4xf32>, vector<4x256xf32>, vector<8x256xf32> -> vector<8x256xf32>
    %c0_4 = arith.constant 0 : index
    %c0_5 = arith.constant 0 : index
    %4 = vector.load %arg5[%c0_4, %c0_5] : memref<8x1xf32, #tpu.memory_space<vmem>>, vector<8x1xf32>
    %5 = vector.broadcast %4 : vector<8x1xf32> to vector<8x256xf32>
    %6 = arith.addf %3, %5 : vector<8x256xf32>
    %cst_6 = arith.constant 3.000000e+00 : f32
    %7 = vector.broadcast %cst_6 : f32 to vector<8x256xf32>
    %8 = arith.addf %6, %7 : vector<8x256xf32>
    %cst_7 = arith.constant 0.000000e+00 : f32
    %cst_8 = arith.constant 6.000000e+00 : f32
    %9 = vector.broadcast %cst_7 : f32 to vector<8x256xf32>
    %10 = arith.maximumf %9, %8 : vector<8x256xf32>
    %11 = vector.broadcast %cst_8 : f32 to vector<8x256xf32>
    %12 = arith.minimumf %11, %10 : vector<8x256xf32>
    %13 = arith.mulf %6, %12 : vector<8x256xf32>
    %cst_9 = arith.constant 0.166666672 : f32
    %14 = vector.broadcast %cst_9 : f32 to vector<8x256xf32>
    %15 = arith.mulf %13, %14 : vector<8x256xf32>
    %c0_10 = arith.constant 0 : index
    %c0_11 = arith.constant 0 : index
    %c0_12 = arith.constant 0 : index
    %16 = vector.load %arg6[%c0_10, %c0_11, %c0_12] : memref<1x8x256xf32, #tpu.memory_space<vmem>>, vector<1x8x256xf32>
    %17 = vector.shape_cast %16 : vector<1x8x256xf32> to vector<8x256xf32>
    %18 = vector.shape_cast %15 : vector<8x256xf32> to vector<1x8x256xf32>
    tpu.vector_store %arg6[%c0_10, %c0_11, %c0_12], %18 {strides = array<i32>} : memref<1x8x256xf32, #tpu.memory_space<vmem>>, vector<1x8x256xf32>,
    return
  }
  func.func @transform_0(%arg0: i32, %arg1: i32, %arg2: i32) -> (i32, i32, i32) {
    %c0_i32 = arith.constant 0 : i32
    %c0_i32_0 = arith.constant 0 : i32
    return %arg0, %c0_i32, %arg2 : i32, i32, i32
  }
  func.func @transform_1(%arg0: i32, %arg1: i32, %arg2: i32) -> (i32, i32) {
    %c0_i32 = arith.constant 0 : i32
    %c0_i32_0 = arith.constant 0 : i32
    return %arg1, %c0_i32 : i32, i32
  }
  func.func @transform_2(%arg0: i32, %arg1: i32, %arg2: i32) -> (i32, i32) {
    %c0_i32 = arith.constant 0 : i32
    %c0_i32_0 = arith.constant 0 : i32
    return %arg1, %c0_i32 : i32, i32
  }
  func.func @transform_3(%arg0: i32, %arg1: i32, %arg2: i32) -> (i32, i32, i32) {
    %c0_i32 = arith.constant 0 : i32
    return %arg0, %arg1, %arg2 : i32, i32, i32
  }
}

</mosaic_0001>

<llo_original>
// kernel: tpu_custom_call.1
$region0: #{tpu_custom_call.1}
  #allocation0 [shape = 'u32[]', space=smem, size = 0x4, offset = 0x4, fixed_abs, tag = 'smem constant byte address 0x4 - core index']
  #allocation1 [shape = 'u32[144,128]{1,0:T(1,128)}', space=vmem, size = 0x12000, scoped, tag = 'internal scratch']
  %s0 = inlined_call_operand.vmem [shape: f32[2,4,256], index: 0, kind: input, shape index: {}]
  %s1 = inlined_call_operand.vmem [shape: f32[8,4], index: 1, kind: input, shape index: {}]
  %s2 = inlined_call_operand.vmem [shape: f32[8,1], index: 2, kind: input, shape index: {}]
  %s3 = inlined_call_operand.hbm [shape: f32[2,8,256], index: 3, kind: output, shape index: {}]
  %s4 = sld [smem:[#allocation0]]
  $region45: #{tpu_custom_call.1} parent=0
    _
  %s6 = ssub.s32 1, %s4
  %s7 = scalar_select 0, %s6, %s4
  $region1: #{tpu_custom_call.1} parent=0
    #allocation2 [shape = 'u8[16384]{0}', space=vmem, size = 0x4000, scoped, tag = 'output window, operand 0']
    #allocation3 [shape = 's32[2]{0}', space=sflag, size = 0x8, scoped, tag = 'scoped memory for tpu_custom_call.1']
    %8 = vsyncpa [#allocation3], 0
    %s9 = scalar_lea.sflag [#allocation3], 1
    %10 = vsyncpa %s9, 0
    loop: start=0, step=1, limit=4
    $region2: #{tpu_custom_call.1} parent=1 // loop_pre_header
      _
    $region3: #{tpu_custom_call.1} parent=1 // loop_header
      %s12 = sphi 0, %s16
      %p13 = scmp.ge.s32.totalorder %s12, 4
      %s19 = sphi 0, %s38
      %s20 = sphi 0, %s34
      %s21 = sphi 0, %s30
      %s22 = sphi 0, %s19
      %s23 = sphi 0, %s20
      %s24 = sphi 0, %s21
      %s25 = sphi 0, %s22
      %s26 = sphi 0, %s23
      %s27 = sphi 0, %s24
      %s43 = sphi 0, %s45
      %s46 = sphi 0, %s43
      %s47 = sphi 0, %s46
      %s63 = sphi 0, %s47
      %s69 = sphi 0, %s71
      %s72 = sphi 0, %s69
      %s73 = sphi 0, %s72
      %s89 = sphi 0, %s73
      %s95 = sphi 0, %s97
      %s98 = sphi 0, %s95
      %s99 = sphi 0, %s98
      %s115 = sphi 0, %s99
      %s125 = sphi 0, %s127
      %s128 = sphi 0, %s125
      %s129 = sphi 0, %s128
      %s145 = sphi 0, %s129
    $region4: #{tpu_custom_call.1} parent=1 // loop_header_branch
      %15 = sbr.rel (%p13) target = $region8
    $region5: #{tpu_custom_call.1} parent=1 // loop_body
      %s17 = ssub.s32 %s12, 1
      %s18 = ssub.s32 %s12, 2
      %s28 = sadd.s32 1, %s21
      %p29 = scmp.ge.s32.totalorder %s28, 1
      %s30 = scalar_select %p29, 0, %s28
      %s31 = sadd.s32 1, %s20
      %s32 = scalar_select %p29, %s31, %s20
      %p33 = scmp.ge.s32.totalorder %s32, 1
      %s34 = scalar_select %p33, 0, %s32
      %s35 = sadd.s32 1, %s19
      %s36 = scalar_select %p33, %s35, %s19
      %p37 = scmp.ge.s32.totalorder %s36, 2
      %s38 = scalar_select %p37, 0, %s36
      %s39 = ssub.s32 %s19, %s38
      %s40 = ssub.s32 %s21, %s30
      %s41 = sor.u32 %s39, %s40
      %p42 = scmp.eq.s32.totalorder %s41, 0
      %s44 = sadd.s32 %s43, 1
      %s45 = scalar_select %p42, %s43, %s44
      %p48 = pneg %p42
      %p49 = scmp.eq.s32.totalorder %s12, 1
      %p50 = por %p48, %p49
      %p51 = scmp.ne.s32.totalorder %s43, %s46
      %p52 = scmp.eq.s32.totalorder %s12, 0
      %p53 = por %p51, %p52
      %p54 = scmp.ne.s32.totalorder %s43, %s46
      %p55 = scmp.eq.s32.totalorder %s17, 1
      %p56 = por %p54, %p55
      %p57 = scmp.ne.s32.totalorder %s46, %s47
      %p58 = scmp.eq.s32.totalorder %s17, 0
      %p59 = por %p57, %p58
      %p60 = scmp.ne.s32.totalorder %s46, %s47
      %p61 = scmp.eq.s32.totalorder %s18, 1
      %p62 = por %p60, %p61
      %p64 = scmp.ne.s32.totalorder %s47, %s63
      %p65 = scmp.eq.s32.totalorder %s18, 0
      %p66 = por %p64, %p65
      %s67 = ssub.s32 %s20, %s34
      %p68 = scmp.eq.s32.totalorder %s67, 0
      %s70 = sadd.s32 %s69, 1
      %s71 = scalar_select %p68, %s69, %s70
      %p74 = pneg %p68
      %p75 = scmp.eq.s32.totalorder %s12, 1
      %p76 = por %p74, %p75
      %p77 = scmp.ne.s32.totalorder %s69, %s72
      %p78 = scmp.eq.s32.totalorder %s12, 0
      %p79 = por %p77, %p78
      %p80 = scmp.ne.s32.totalorder %s69, %s72
      %p81 = scmp.eq.s32.totalorder %s17, 1
      %p82 = por %p80, %p81
      %p83 = scmp.ne.s32.totalorder %s72, %s73
      %p84 = scmp.eq.s32.totalorder %s17, 0
      %p85 = por %p83, %p84
      %p86 = scmp.ne.s32.totalorder %s72, %s73
      %p87 = scmp.eq.s32.totalorder %s18, 1
      %p88 = por %p86, %p87
      %p90 = scmp.ne.s32.totalorder %s73, %s89
      %p91 = scmp.eq.s32.totalorder %s18, 0
      %p92 = por %p90, %p91
      %s93 = ssub.s32 %s20, %s34
      %p94 = scmp.eq.s32.totalorder %s93, 0
      %s96 = sadd.s32 %s95, 1
      %s97 = scalar_select %p94, %s95, %s96
      %p100 = pneg %p94
      %p101 = scmp.eq.s32.totalorder %s12, 1
      %p102 = por %p100, %p101
      %p103 = scmp.ne.s32.totalorder %s95, %s98
      %p104 = scmp.eq.s32.totalorder %s12, 0
      %p105 = por %p103, %p104
      %p106 = scmp.ne.s32.totalorder %s95, %s98
      %p107 = scmp.eq.s32.totalorder %s17, 1
      %p108 = por %p106, %p107
      %p109 = scmp.ne.s32.totalorder %s98, %s99
      %p110 = scmp.eq.s32.totalorder %s17, 0
      %p111 = por %p109, %p110
      %p112 = scmp.ne.s32.totalorder %s98, %s99
      %p113 = scmp.eq.s32.totalorder %s18, 1
      %p114 = por %p112, %p113
      %p116 = scmp.ne.s32.totalorder %s99, %s115
      %p117 = scmp.eq.s32.totalorder %s18, 0
      %p118 = por %p116, %p117
      %s119 = ssub.s32 %s19, %s38
      %s120 = ssub.s32 %s20, %s34
      %s121 = sor.u32 %s119, %s120
      %s122 = ssub.s32 %s21, %s30
      %s123 = sor.u32 %s121, %s122
      %p124 = scmp.eq.s32.totalorder %s123, 0
      %s126 = sadd.s32 %s125, 1
      %s127 = scalar_select %p124, %s125, %s126
      %p130 = pneg %p124
      %p131 = scmp.eq.s32.totalorder %s12, 1
      %p132 = por %p130, %p131
      %p133 = scmp.ne.s32.totalorder %s125, %s128
      %p134 = scmp.eq.s32.totalorder %s12, 0
      %p135 = por %p133, %p134
      %p136 = scmp.ne.s32.totalorder %s125, %s128
      %p137 = scmp.eq.s32.totalorder %s17, 1
      %p138 = por %p136, %p137
      %p139 = scmp.ne.s32.totalorder %s128, %s129
      %p140 = scmp.eq.s32.totalorder %s17, 0
      %p141 = por %p139, %p140
      %p142 = scmp.ne.s32.totalorder %s128, %s129
      %p143 = scmp.eq.s32.totalorder %s18, 1
      %p144 = por %p142, %p143
      %p146 = scmp.ne.s32.totalorder %s129, %s145
      %p147 = scmp.eq.s32.totalorder %s18, 0
      %p148 = por %p146, %p147
      %p149 = scmp.le.s32.totalorder 1, %s12
      %p150 = scmp.lt.s32.totalorder %s12, 3
      %p151 = pnand %p149, %p150
      %p152 = pneg %p151
      // Predicated region
      $region9: #{tpu_custom_call.1} parent=5 // pred_check
        _
      $region10: #{tpu_custom_call.1} parent=5 // pred_check_branch
        %154 = sbr.rel (%p151) target = $region12
      $region11: #{tpu_custom_call.1} parent=5 // pred_region
        %s155 = ssub.s32 %s12, 1
        // Predicated region
        $region13: #{tpu_custom_call.1} parent=11 // pred_check
          %p156 = pneg %p85
        $region14: #{tpu_custom_call.1} parent=11 // pred_check_branch
          %158 = sbr.rel (%p156) target = $region16
        $region15: #{tpu_custom_call.1} parent=11 // pred_region
          %p159 = scmp.lt.s32.totalorder %s23, 0
          %s160 = scalar_select %p159, %s23, 0
          %s161 = smul.addr %s160, 8
          %s162 = scalar_lea.vmem %s1, %s161
        $region16: #{tpu_custom_call.1} parent=11 // pred_fallthru
          _
        // Predicated region
        $region17: #{tpu_custom_call.1} parent=11 // pred_check
          %p163 = pneg %p111
        $region18: #{tpu_custom_call.1} parent=11 // pred_check_branch
          %165 = sbr.rel (%p163) target = $region20
        $region19: #{tpu_custom_call.1} parent=11 // pred_region
          %p166 = scmp.lt.s32.totalorder %s23, 0
          %s167 = scalar_select %p166, %s23, 0
          %s168 = smul.addr %s167, 8
          %s169 = scalar_lea.vmem %s2, %s168
        $region20: #{tpu_custom_call.1} parent=11 // pred_fallthru
          _
      $region12: #{tpu_custom_call.1} parent=5 // pred_fallthru
        _
      %p170 = scmp.lt.s32.totalorder %s12, 2
      // Predicated region
      $region21: #{tpu_custom_call.1} parent=5 // pred_check
        %p171 = pneg %p170
      $region22: #{tpu_custom_call.1} parent=5 // pred_check_branch
        %173 = sbr.rel (%p171) target = $region24
      $region23: #{tpu_custom_call.1} parent=5 // pred_region
        // Predicated region
        $region25: #{tpu_custom_call.1} parent=23 // pred_check
          %p174 = pneg %p53
        $region26: #{tpu_custom_call.1} parent=23 // pred_check_branch
          %176 = sbr.rel (%p174) target = $region28
        $region27: #{tpu_custom_call.1} parent=23 // pred_region
          %s177 = smul.u32 2, %s21
          %p178 = scmp.lt.s32.totalorder %s19, 1
          %s179 = scalar_select %p178, %s19, 1
          %p180 = scmp.lt.s32.totalorder %s177, 1
          %s181 = scalar_select %p180, %s177, 1
          %s182 = smul.addr %s179, 2
          %s183 = sadd.s32 %s181, %s182
          %s184 = smul.addr %s183, 4
          %s185 = scalar_lea.vmem %s0, %s184
          %s186 = smul.u32 2, %s21
        $region28: #{tpu_custom_call.1} parent=23 // pred_fallthru
          _
      $region24: #{tpu_custom_call.1} parent=5 // pred_fallthru
        _
      %p187 = scmp.le.s32.totalorder 1, %s12
      %p188 = scmp.lt.s32.totalorder %s12, 3
      %p189 = pnand %p187, %p188
      %p190 = pneg %p189
      // Predicated region
      $region29: #{tpu_custom_call.1} parent=5 // pred_check
        _
      $region30: #{tpu_custom_call.1} parent=5 // pred_check_branch
        %192 = sbr.rel (%p189) target = $region32
      $region31: #{tpu_custom_call.1} parent=5 // pred_region
        %s193 = ssub.s32 %s12, 1
        %s194 = smul.u32 2, %s24
        %p195 = scmp.lt.s32.totalorder %s22, 1
        %s196 = scalar_select %p195, %s22, 1
        %p197 = scmp.lt.s32.totalorder %s194, 1
        %s198 = scalar_select %p197, %s194, 1
        %s199 = smul.addr %s196, 2
        %s200 = sadd.s32 %s198, %s199
        %s201 = smul.addr %s200, 4
        %s202 = scalar_lea.vmem %s0, %s201
        %p203 = pneg %p59
        %p204 = pneg %p56
        %p205 = scmp.lt.s32.totalorder %s23, 0
        %s206 = scalar_select %p205, %s23, 0
        %s207 = smul.addr %s206, 8
        %s208 = scalar_lea.vmem %s1, %s207
        %p209 = pneg %p85
        %p210 = pneg %p82
        %p211 = scmp.lt.s32.totalorder %s23, 0
        %s212 = scalar_select %p211, %s23, 0
        %s213 = smul.addr %s212, 8
        %s214 = scalar_lea.vmem %s2, %s213
        %p215 = pneg %p111
        %p216 = pneg %p108
        %p217 = pneg %p141
        %p218 = pneg %p138
        %s219 = sand.u32 %s128, 1
        %s220 = scalar_lea.sflag [#allocation3], %s219
        %s221 = sand.u32 %s128, 1
        %s222 = smul.addr %s221, 16
        %s223 = scalar_lea.vmem [#allocation2], %s222
        %s224 = smul.u32 2, %s24
        %p225 = scmp.lt.s32.totalorder %s22, 1
        %s226 = scalar_select %p225, %s22, 1
        %p227 = scmp.lt.s32.totalorder %s224, 1
        %s228 = scalar_select %p227, %s224, 1
        %s229 = smul.addr %s226, 2
        %s230 = sadd.s32 %s228, %s229
        %s231 = smul.addr %s230, 4
        %s232 = scalar_lea.vmem %s0, %s231
        %s233 = smul.u32 2, %s24
        %p234 = scmp.lt.s32.totalorder %s23, 0
        %s235 = scalar_select %p234, %s23, 0
        %s236 = smul.addr %s235, 8
        %s237 = scalar_lea.vmem %s1, %s236
        %p238 = scmp.lt.s32.totalorder %s23, 0
        %s239 = scalar_select %p238, %s23, 0
        %s240 = smul.addr %s239, 8
        %s241 = scalar_lea.vmem %s2, %s240
        %s242 = smul.u32 2, %s24
        %v243 = vld [vmem:[%s237] sm:$0xff]
        %v244 = vld [vmem:[%s232] sm:$0xff]
        %v245 = vld [vmem:[%s241] sm:$0xff]
        %247 = vset.pattern.permute.xlu0 0
        %248 = vperm.xlu0 %247, %v245
        %v249 = vpop.permute.xlu0 %248
        %v252 = vcombine.high %v244, %v244
        %vm253 = vcmask 31744
        %v255 = vsel %vm253, %v243, 0
        %vm257 = vcmask 1043456
        %v258 = vsel %vm257, %v244, 0
        %v260 = vsel %vm257, %v252, 0
        %262 = vmatprep.subr.mxu0 %v260
        %263 = vmatpush1.msra.mxu0 %v258
        %264 = vmatprep.subr.mxu0 0.0
        %265 = vmatpush1.msra.mxu0 0.0
        %266 = vmatprep.subr.mxu0 0.0
        %267 = vmatpush1.msra.mxu0 0.0
        %268 = vmatprep.subr.mxu0 0.0
        %269 = vmatpush1.msra.mxu0 0.0
        %270 = vmatprep.subr.mxu0 0.0
        %271 = vmatpush1.msra.mxu0 0.0
        %272 = vmatprep.subr.mxu0 0.0
        %273 = vmatpush1.msra.mxu0 0.0
        %274 = vmatprep.subr.mxu0 0.0
        %275 = vmatpush1.msra.mxu0 0.0
        %276 = vmatprep.subr.mxu0 0.0
        %277 = vmatpush1.msra.mxu0 0.0
        %278 = vmatprep.subr.mxu0 0.0
        %279 = vmatpush1.msra.mxu0 0.0
        %280 = vmatprep.subr.mxu0 0.0
        %281 = vmatpush1.msra.mxu0 0.0
        %282 = vmatprep.subr.mxu0 0.0
        %283 = vmatpush1.msra.mxu0 0.0
        %284 = vmatprep.subr.mxu0 0.0
        %285 = vmatpush1.msra.mxu0 0.0
        %286 = vmatprep.subr.mxu0 0.0
        %287 = vmatpush1.msra.mxu0 0.0
        %288 = vmatprep.subr.mxu0 0.0
        %289 = vmatpush1.msra.mxu0 0.0
        %290 = vmatprep.subr.mxu0 0.0
        %291 = vmatpush1.msra.mxu0 0.0
        %292 = vmatprep.subr.mxu0 0.0
        %293 = vmatpush1.msra.mxu0 0.0
        %294 = vmatprep.subr.mxu0 0.0
        %295 = vmatpush1.msra.mxu0 0.0
        %296 = vmatprep.subr.mxu0 0.0
        %297 = vmatpush1.msra.mxu0 0.0
        %298 = vmatprep.subr.mxu0 0.0
        %299 = vmatpush1.msra.mxu0 0.0
        %300 = vmatprep.subr.mxu0 0.0
        %301 = vmatpush1.msra.mxu0 0.0
        %302 = vmatprep.subr.mxu0 0.0
        %303 = vmatpush1.msra.mxu0 0.0
        %304 = vmatprep.subr.mxu0 0.0
        %305 = vmatpush1.msra.mxu0 0.0
        %306 = vmatprep.subr.mxu0 0.0
        %307 = vmatpush1.msra.mxu0 0.0
        %308 = vmatprep.subr.mxu0 0.0
        %309 = vmatpush1.msra.mxu0 0.0
        %310 = vmatprep.subr.mxu0 0.0
        %311 = vmatpush1.msra.mxu0 0.0
        %312 = vmatprep.subr.mxu0 0.0
        %313 = vmatpush1.msra.mxu0 0.0
        %314 = vmatprep.subr.mxu0 0.0
        %315 = vmatpush1.msra.mxu0 0.0
        %316 = vmatprep.subr.mxu0 0.0
        %317 = vmatpush1.msra.mxu0 0.0
        %318 = vmatprep.subr.mxu0 0.0
        %319 = vmatpush1.msra.mxu0 0.0
        %320 = vmatprep.subr.mxu0 0.0
        %321 = vmatpush1.msra.mxu0 0.0
        %322 = vmatprep.subr.mxu0 0.0
        %323 = vmatpush1.msra.mxu0 0.0
        %324 = vmatprep.subr.mxu0 0.0
        %325 = vmatpush1.msra.mxu0 0.0
        %326 = vmatprep.mubr.f32.mxu0 0.0
        %327 = vmatmul.mubr.f32.gmra.mrb[0].mxu0 %v255
        %v328 = vpop.f32.mrb[0].mxu0
        %v329 = vadd.f32 %v249, %v328
        %v330 = vpop.f32.mrb[0].mxu0
        %v331 = vadd.f32 %v249, %v330
        %332 = vdwg.mxu0
        %v333 = vadd.f32 %v329, 3.0
        %v334 = vadd.f32 %v331, 3.0
        %v335 = vmax.f32 %v333, 0.0
        %v336 = vmax.f32 %v334, 0.0
        %v337 = vmin.f32 %v335, 6.0
        %v338 = vmin.f32 %v336, 6.0
        %v339 = vmul.f32 %v329, %v337
        %v340 = vmul.f32 %v331, %v338
        %v341 = vmul.f32 %v339, 0.16666667
        %v342 = vmul.f32 %v340, 0.16666667
        %343 = vst [vmem:[%s223] sm:$0xff] %v341
        %344 = vst [vmem:[%s223 + $0x8] sm:$0xff] %v342
        %s345 = sand.u32 %s128, 1
        %s346 = scalar_lea.sflag [#allocation3], %s345
        %s347 = sand.u32 %s128, 1
        %s348 = smul.addr %s347, 16
        %s349 = scalar_lea.vmem [#allocation2], %s348
        // Predicated region
        $region33: #{tpu_custom_call.1} parent=31 // pred_check
          %p350 = pneg %p138
        $region34: #{tpu_custom_call.1} parent=31 // pred_check_branch
          %352 = sbr.rel (%p350) target = $region36
        $region35: #{tpu_custom_call.1} parent=31 // pred_region
          %s353 = smul.u32 2, %s24
          %s355 = ssub.s32 256, 256
          %356 = vsyncadd %s346, %s355
          %s357 = smul.addr %s23, 2
          %s358 = sadd.s32 %s353, %s357
          %s359 = smul.addr %s22, 2
          %s360 = sadd.s32 %s358, %s359
          %s361 = smul.addr %s360, 128
          %s362 = scalar_lea.hbm %s3, %s361
          %s364 = sshll.u32 %s349, 4
          %s365 = int_to_ptr.vmem [resolvable:$true] %s364
          %367 = dma.vmem_to_hbm [thread:$0]  %s365, 256, %s362, %s346
        $region36: #{tpu_custom_call.1} parent=31 // pred_fallthru
          _
      $region32: #{tpu_custom_call.1} parent=5 // pred_fallthru
        _
      %p368 = scmp.le.s32.totalorder 2, %s12
      // Predicated region
      $region37: #{tpu_custom_call.1} parent=5 // pred_check
        %p369 = pneg %p368
      $region38: #{tpu_custom_call.1} parent=5 // pred_check_branch
        %371 = sbr.rel (%p369) target = $region40
      $region39: #{tpu_custom_call.1} parent=5 // pred_region
        %s372 = ssub.s32 %s12, 2
        // Predicated region
        $region41: #{tpu_custom_call.1} parent=39 // pred_check
          %p373 = pneg %p144
        $region42: #{tpu_custom_call.1} parent=39 // pred_check_branch
          %375 = sbr.rel (%p373) target = $region44
        $region43: #{tpu_custom_call.1} parent=39 // pred_region
          %s376 = sand.u32 %s129, 1
          %s377 = scalar_lea.sflag [#allocation3], %s376
          %s378 = sand.u32 %s129, 1
          %s379 = smul.addr %s378, 16
          %s380 = scalar_lea.vmem [#allocation2], %s379
          %381 = dma.done %s377, 256
        $region44: #{tpu_custom_call.1} parent=39 // pred_fallthru
          _
      $region40: #{tpu_custom_call.1} parent=5 // pred_fallthru
        _
    $region6: #{tpu_custom_call.1} parent=1 // loop_footer
      %s16 = sadd.s32 1, %s12
    $region7: #{tpu_custom_call.1} parent=1 // loop_footer_branch
      %11 = sbr.rel target = $region3
    $region8: #{tpu_custom_call.1} parent=1 // loop_exit
      _
    %382 = vsyncpa [#allocation3], 1
    %s383 = scalar_lea.sflag [#allocation3], 1
    %384 = vsyncpa %s383, 1

</llo_original>
